<compile_context>
chip_gen: v7x
topology: tpu7x:2x2x1
jax: 0.10.0
libtpu: 0.0.40
codegen_flags: <defaults>
</compile_context>

<pallas_src>
import functools

import jax
import jax.numpy as jnp
from jax.experimental import pallas as pl
from jax.experimental.pallas import tpu as pltpu


def _lm_head_kernel(x_ref, g_ref, w_ref, tok_ref,
                    xn_ref, mval_ref, midx_ref, *, eps, tile_v, vocab):
    j = pl.program_id(0)

    # --- init: RMSNorm the (small, resident) hidden block once, reset state ---
    @pl.when(j == 0)
    def _():
        x = x_ref[...].astype(jnp.float32)
        var = jnp.mean(x * x, axis=-1, keepdims=True)
        xn = x * jax.lax.rsqrt(var + eps) * g_ref[...].astype(jnp.float32)
        xn_ref[...] = xn.astype(xn_ref.dtype)                  # keep bf16 for MXU
        mval_ref[...] = jnp.full_like(mval_ref, -jnp.inf)
        midx_ref[...] = jnp.zeros_like(midx_ref)

    # --- matmul against this vocab-major weight tile (bf16 MXU, f32 acc) ---
    # xn: [S, H] bf16, w tile: [tile_v, H] bf16, contract on H -> [S, tile_v]
    logits = jax.lax.dot_general(
        xn_ref[...], w_ref[...],
        dimension_numbers=(((1,), (1,)), ((), ())),
        preferred_element_type=jnp.float32)

    # global vocab column index of each lane; mask padded columns to -inf
    col = jax.lax.broadcasted_iota(jnp.int32, logits.shape, 1) + j * tile_v
    logits = jnp.where(col < vocab, logits, -jnp.inf)

    # --- running argmax over vocab tiles (first occurrence on ties) ---
    tile_max = jnp.max(logits, axis=-1, keepdims=True)
    big = jnp.array(jnp.iinfo(jnp.int32).max, jnp.int32)
    tile_arg = jnp.min(jnp.where(logits == tile_max, col, big),
                       axis=-1, keepdims=True)

    better = tile_max > mval_ref[...]          # strict > keeps earliest tile on ties
    midx_ref[...] = jnp.where(better, tile_arg, midx_ref[...])
    mval_ref[...] = jnp.where(better, tile_max, mval_ref[...])

    # --- finalize ---
    @pl.when(j == pl.num_programs(0) - 1)
    def _():
        tok_ref[...] = midx_ref[...]


def lm_head(hidden_states, gamma, weight, *, eps=1e-5, tile_v=1024):
    """hidden_states: [S, H] f32, gamma: [H] f32, weight: [V, H] (PyTorch Linear
    layout, any float dtype) -> token ids [S, 1] i32."""
    S, H = hidden_states.shape
    V, Hw = weight.shape
    assert H == Hw
    assert tile_v % 128 == 0, "tile_v must be lane-aligned (multiple of 128)"

    # Stream weights as bf16, vocab-major (rows are H-contiguous in HBM).
    w = weight.astype(jnp.bfloat16)
    v_pad = tile_v * pl.cdiv(V, tile_v)
    if v_pad != V:
        w = jnp.pad(w, ((0, v_pad - V), (0, 0)))
    num_tiles = v_pad // tile_v
    gamma2d = gamma.reshape(1, H)

    # VMEM budget: double-buffered bf16 weight tile dominates; add headroom but
    # stay under v7x's 64 MiB physical VMEM.
    w_tile_bytes = 2 * tile_v * H * 2
    resident = 2 * (S * H * 4 + H * 4) + S * H * 2 + 16 * S
    vmem_limit = min(max(2 * (w_tile_bytes + resident) + (4 << 20), 16 << 20),
                     60 << 20)

    kernel = functools.partial(_lm_head_kernel, eps=eps, tile_v=tile_v, vocab=V)
    cost = pl.CostEstimate(
        flops=2 * S * H * v_pad,
        transcendentals=0,
        bytes_accessed=v_pad * H * 2 + S * H * 4 + H * 4 + S * 4)

    return pl.pallas_call(
        kernel,
        out_shape=jax.ShapeDtypeStruct((S, 1), jnp.int32),
        grid_spec=pltpu.PrefetchScalarGridSpec(
            num_scalar_prefetch=0,
            grid=(num_tiles,),
            in_specs=[
                pl.BlockSpec((S, H), lambda j: (0, 0)),        # hidden_states (resident)
                pl.BlockSpec((1, H), lambda j: (0, 0)),        # RMSNorm gamma
                pl.BlockSpec((tile_v, H), lambda j: (j, 0)),   # weight vocab tile [V,H]
            ],
            out_specs=pl.BlockSpec((S, 1), lambda j: (0, 0)),  # token ids (accumulated)
            scratch_shapes=[
                pltpu.VMEM((S, H), jnp.bfloat16),  # normed hidden (bf16 for MXU)
                pltpu.VMEM((S, 1), jnp.float32),   # running max value
                pltpu.VMEM((S, 1), jnp.int32),     # running argmax index
            ],
        ),
        compiler_params=pltpu.CompilerParams(
            dimension_semantics=("arbitrary",),    # vocab axis is a reduction
            vmem_limit_bytes=vmem_limit),
        cost_estimate=cost,
    )(hidden_states, gamma2d, w)


def lm_head_ref(hidden_states, gamma, weight_vh, eps=1e-5):
    """Reference with the same bf16 weight-streaming numerics as the kernel."""
    x = hidden_states.astype(jnp.float32)
    var = jnp.mean(x * x, axis=-1, keepdims=True)
    y = (x * jax.lax.rsqrt(var + eps) * gamma).astype(jnp.bfloat16)
    logits = jax.lax.dot_general(
        y, weight_vh.astype(jnp.bfloat16),
        dimension_numbers=(((1,), (1,)), ((), ())),
        preferred_element_type=jnp.float32)
    return jnp.argmax(logits, axis=-1, keepdims=True).astype(jnp.int32)


if __name__ == "__main__":
    # Small synthetic shapes consistent with the forward: S tokens, hidden H,
    # vocab V (deliberately NOT a tile multiple to exercise the padding mask).
    S, H, V = 8, 256, 1000
    key = jax.random.PRNGKey(0)
    k_x, k_g, k_w = jax.random.split(key, 3)
    hidden_states = jax.random.normal(k_x, (S, H), dtype=jnp.float32)
    gamma = 1.0 + 0.02 * jax.random.normal(k_g, (H,), dtype=jnp.float32)
    # PyTorch Linear(H -> V, bias=False) weight layout: [V, H]
    weight = 0.05 * jax.random.normal(k_w, (V, H), dtype=jnp.float32)

    token = jax.block_until_ready(
        lm_head(hidden_states, gamma, weight, tile_v=256))
    ref = lm_head_ref(hidden_states, gamma, weight)
    assert token.shape == (S, 1) and token.dtype == jnp.int32
    assert bool(jnp.all(token == ref)), (token, ref)
    print("KERNEL_OK")
</pallas_src>

<mosaic_0001>
module attributes {stable_mosaic.version = 11 : i64} {
  func.func @_lm_head_kernel(%arg0: i32, %arg1: memref<8x256xf32, #tpu.memory_space<vmem>>, %arg2: memref<1x256xf32, #tpu.memory_space<vmem>>, %arg3: memref<256x256xbf16, #tpu.memory_space<vmem>>, %arg4: memref<8x1xi32, #tpu.memory_space<vmem>>, %arg5: memref<8x256xbf16, #tpu.memory_space<vmem>>, %arg6: memref<8x1xf32, #tpu.memory_space<vmem>>, %arg7: memref<8x1xi32, #tpu.memory_space<vmem>>) attributes {dimension_semantics = [#tpu.dimension_semantics<arbitrary>], iteration_bounds = array<i64: 4>, scalar_prefetch = 0 : i64, scratch_operands = 3 : i64, tpu.core_type = #tpu.core_type<tc>, window_params = [{pipeline_mode = #tpu.pipeline_mode<synchronous>, transform_indices = @transform_0, window_bounds = array<i64: 8, 256>}, {pipeline_mode = #tpu.pipeline_mode<synchronous>, transform_indices = @transform_1, window_bounds = array<i64: 1, 256>}, {transform_indices = @transform_2, window_bounds = array<i64: 256, 256>}, {pipeline_mode = #tpu.pipeline_mode<synchronous>, transform_indices = @transform_3, window_bounds = array<i64: 8, 1>}]} {
    %c0_i32 = arith.constant 0 : i32
    %0 = arith.cmpi eq, %arg0, %c0_i32 : i32
    %1 = arith.extui %0 : i1 to i32
    %c0_i32_0 = arith.constant 0 : i32
    %2 = arith.cmpi ne, %1, %c0_i32_0 : i32
    scf.if %2 {
      %c0_18 = arith.constant 0 : index
      %c0_19 = arith.constant 0 : index
      %33 = vector.load %arg1[%c0_18, %c0_19] : memref<8x256xf32, #tpu.memory_space<vmem>>, vector<8x256xf32>
      %34 = arith.mulf %33, %33 : vector<8x256xf32>
      %cst_20 = arith.constant dense<0.000000e+00> : vector<8xf32>
      %35 = vector.multi_reduction <add>, %34, %cst_20 [1] : vector<8x256xf32> to vector<8xf32>
      %36 = vector.shape_cast %35 : vector<8xf32> to vector<8x1xf32>
      %cst_21 = arith.constant 2.560000e+02 : f32
      %37 = vector.broadcast %cst_21 : f32 to vector<8x1xf32>
      %38 = arith.divf %36, %37 : vector<8x1xf32>
      %cst_22 = arith.constant 9.99999974E-6 : f32
      %39 = vector.broadcast %cst_22 : f32 to vector<8x1xf32>
      %40 = arith.addf %38, %39 : vector<8x1xf32>
      %41 = math.rsqrt %40 : vector<8x1xf32>
      %42 = vector.broadcast %41 : vector<8x1xf32> to vector<8x256xf32>
      %43 = arith.mulf %33, %42 : vector<8x256xf32>
      %c0_23 = arith.constant 0 : index
      %c0_24 = arith.constant 0 : index
      %44 = vector.load %arg2[%c0_23, %c0_24] : memref<1x256xf32, #tpu.memory_space<vmem>>, vector<1x256xf32>
      %45 = vector.broadcast %44 : vector<1x256xf32> to vector<8x256xf32>
      %46 = arith.mulf %43, %45 : vector<8x256xf32>
      %47 = arith.truncf %46 : vector<8x256xf32> to vector<8x256xbf16>
      %c0_25 = arith.constant 0 : index
      %c0_26 = arith.constant 0 : index
      %48 = vector.load %arg5[%c0_25, %c0_26] : memref<8x256xbf16, #tpu.memory_space<vmem>>, vector<8x256xbf16>
      tpu.vector_store %arg5[%c0_25, %c0_26], %47 {strides = array<i32>} : memref<8x256xbf16, #tpu.memory_space<vmem>>, vector<8x256xbf16>,
      %cst_27 = arith.constant 0xFF800000 : f32
      %49 = vector.broadcast %cst_27 : f32 to vector<8x1xf32>
      %c0_28 = arith.constant 0 : index
      %c0_29 = arith.constant 0 : index
      %50 = vector.load %arg6[%c0_28, %c0_29] : memref<8x1xf32, #tpu.memory_space<vmem>>, vector<8x1xf32>
      tpu.vector_store %arg6[%c0_28, %c0_29], %49 {strides = array<i32>} : memref<8x1xf32, #tpu.memory_space<vmem>>, vector<8x1xf32>,
      %c0_i32_30 = arith.constant 0 : i32
      %51 = vector.broadcast %c0_i32_30 : i32 to vector<8x1xi32>
      %c0_31 = arith.constant 0 : index
      %c0_32 = arith.constant 0 : index
      %52 = vector.load %arg7[%c0_31, %c0_32] : memref<8x1xi32, #tpu.memory_space<vmem>>, vector<8x1xi32>
      tpu.vector_store %arg7[%c0_31, %c0_32], %51 {strides = array<i32>} : memref<8x1xi32, #tpu.memory_space<vmem>>, vector<8x1xi32>,
    } else {
    }
    %c0 = arith.constant 0 : index
    %c0_1 = arith.constant 0 : index
    %3 = vector.load %arg5[%c0, %c0_1] : memref<8x256xbf16, #tpu.memory_space<vmem>>, vector<8x256xbf16>
    %c0_2 = arith.constant 0 : index
    %c0_3 = arith.constant 0 : index
    %4 = vector.load %arg3[%c0_2, %c0_3] : memref<256x256xbf16, #tpu.memory_space<vmem>>, vector<256x256xbf16>
    %cst = arith.constant dense<0.000000e+00> : vector<8x256xf32>
    %5 = tpu.matmul %3, %4, %cst {dimension_numbers = #tpu.dot_dimension_numbers<[1], [1], [0], [0], [0, 0, 1, 0], [], []>} : vector<8x256xbf16>, vector<256x256xbf16>, vector<8x256xf32> -> vector<8x256xf32>
    %6 = tpu.iota {dimensions = array<i32: 1>} : vector<8x256xi32>
    %c256_i32 = arith.constant 256 : i32
    %7 = arith.muli %arg0, %c256_i32 : i32
    %8 = vector.broadcast %7 : i32 to vector<8x256xi32>
    %9 = arith.addi %6, %8 : vector<8x256xi32>
    %c1000_i32 = arith.constant 1000 : i32
    %10 = vector.broadcast %c1000_i32 : i32 to vector<8x256xi32>
    %11 = arith.cmpi slt, %9, %10 : vector<8x256xi32>
    %cst_4 = arith.constant 0xFF800000 : f32
    %12 = vector.broadcast %cst_4 : f32 to vector<8x256xf32>
    %13 = arith.select %11, %5, %12 : vector<8x256xi1>, vector<8x256xf32>
    %cst_5 = arith.constant dense<0xFF800000> : vector<8xf32>
    %14 = vector.multi_reduction <maximumf>, %13, %cst_5 [1] : vector<8x256xf32> to vector<8xf32>
    %15 = vector.shape_cast %14 : vector<8xf32> to vector<8x1xf32>
    %16 = vector.broadcast %15 : vector<8x1xf32> to vector<8x256xf32>
    %17 = arith.cmpf oeq, %13, %16 : vector<8x256xf32>
    %c2147483647_i32 = arith.constant 2147483647 : i32
    %18 = vector.broadcast %c2147483647_i32 : i32 to vector<8x256xi32>
    %19 = arith.select %17, %9, %18 : vector<8x256xi1>, vector<8x256xi32>
    %cst_6 = arith.constant dense<2147483647> : vector<8xi32>
    %20 = vector.multi_reduction <minsi>, %19, %cst_6 [1] : vector<8x256xi32> to vector<8xi32>
    %21 = vector.shape_cast %20 : vector<8xi32> to vector<8x1xi32>
    %c0_7 = arith.constant 0 : index
    %c0_8 = arith.constant 0 : index
    %22 = vector.load %arg6[%c0_7, %c0_8] : memref<8x1xf32, #tpu.memory_space<vmem>>, vector<8x1xf32>
    %23 = arith.cmpf ogt, %15, %22 : vector<8x1xf32>
    %c0_9 = arith.constant 0 : index
    %c0_10 = arith.constant 0 : index
    %24 = vector.load %arg7[%c0_9, %c0_10] : memref<8x1xi32, #tpu.memory_space<vmem>>, vector<8x1xi32>
    %25 = arith.select %23, %21, %24 : vector<8x1xi1>, vector<8x1xi32>
    %c0_11 = arith.constant 0 : index
    %c0_12 = arith.constant 0 : index
    %26 = vector.load %arg7[%c0_11, %c0_12] : memref<8x1xi32, #tpu.memory_space<vmem>>, vector<8x1xi32>
    tpu.vector_store %arg7[%c0_11, %c0_12], %25 {strides = array<i32>} : memref<8x1xi32, #tpu.memory_space<vmem>>, vector<8x1xi32>,
    %c0_13 = arith.constant 0 : index
    %c0_14 = arith.constant 0 : index
    %27 = vector.load %arg6[%c0_13, %c0_14] : memref<8x1xf32, #tpu.memory_space<vmem>>, vector<8x1xf32>
    %28 = arith.select %23, %15, %27 : vector<8x1xi1>, vector<8x1xf32>
    %c0_15 = arith.constant 0 : index
    %c0_16 = arith.constant 0 : index
    %29 = vector.load %arg6[%c0_15, %c0_16] : memref<8x1xf32, #tpu.memory_space<vmem>>, vector<8x1xf32>
    tpu.vector_store %arg6[%c0_15, %c0_16], %28 {strides = array<i32>} : memref<8x1xf32, #tpu.memory_space<vmem>>, vector<8x1xf32>,
    %c3_i32 = arith.constant 3 : i32
    %30 = arith.cmpi eq, %arg0, %c3_i32 : i32
    %31 = arith.extui %30 : i1 to i32
    %c0_i32_17 = arith.constant 0 : i32
    %32 = arith.cmpi ne, %31, %c0_i32_17 : i32
    scf.if %32 {
      %c0_18 = arith.constant 0 : index
      %c0_19 = arith.constant 0 : index
      %33 = vector.load %arg7[%c0_18, %c0_19] : memref<8x1xi32, #tpu.memory_space<vmem>>, vector<8x1xi32>
      %c0_20 = arith.constant 0 : index
      %c0_21 = arith.constant 0 : index
      %34 = vector.load %arg4[%c0_20, %c0_21] : memref<8x1xi32, #tpu.memory_space<vmem>>, vector<8x1xi32>
      tpu.vector_store %arg4[%c0_20, %c0_21], %33 {strides = array<i32>} : memref<8x1xi32, #tpu.memory_space<vmem>>, vector<8x1xi32>,
    } else {
    }
    return
  }
  func.func @transform_0(%arg0: i32) -> (i32, i32) {
    %c0_i32 = arith.constant 0 : i32
    %c0_i32_0 = arith.constant 0 : i32
    %c0_i32_1 = arith.constant 0 : i32
    return %c0_i32, %c0_i32_0 : i32, i32
  }
  func.func @transform_1(%arg0: i32) -> (i32, i32) {
    %c0_i32 = arith.constant 0 : i32
    %c0_i32_0 = arith.constant 0 : i32
    %c0_i32_1 = arith.constant 0 : i32
    return %c0_i32, %c0_i32_0 : i32, i32
  }
  func.func @transform_2(%arg0: i32) -> (i32, i32) {
    %c0_i32 = arith.constant 0 : i32
    %c0_i32_0 = arith.constant 0 : i32
    return %arg0, %c0_i32 : i32, i32
  }
  func.func @transform_3(%arg0: i32) -> (i32, i32) {
    %c0_i32 = arith.constant 0 : i32
    %c0_i32_0 = arith.constant 0 : i32
    %c0_i32_1 = arith.constant 0 : i32
    return %c0_i32, %c0_i32_0 : i32, i32
  }
}

</mosaic_0001>

<llo_original>
// kernel: tpu_custom_call.1
$region0: #{tpu_custom_call.1}
  #allocation0 [shape = 'u32[]', space=smem, size = 0x4, offset = 0x4, fixed_abs, tag = 'smem constant byte address 0x4 - core index']
  #allocation1 [shape = 'u32[144,128]{1,0:T(1,128)}', space=vmem, size = 0x12000, scoped, tag = 'internal scratch']
  #allocation2 [shape = 'bf16[8,256]{1,0:T(8,128)(2,1)}', space=vmem, size = 0x1000, scoped, tag = 'scratch operand']
  #allocation3 [shape = 'f32[8,1]{1,0:T(8,128)}', space=vmem, size = 0x1000, scoped, tag = 'scratch operand']
  #allocation4 [shape = 's32[8,1]{1,0:T(8,128)}', space=vmem, size = 0x1000, scoped, tag = 'scratch operand']
  %s0 = inlined_call_operand.hbm [shape: f32[8,256], index: 0, kind: input, shape index: {}]
  %s1 = inlined_call_operand.vmem [shape: f32[1,256], index: 1, kind: input, shape index: {}]
  %s2 = inlined_call_operand.hbm [shape: bf16[1024,256], index: 2, kind: input, shape index: {}]
  %s3 = inlined_call_operand.vmem [shape: s32[8,1], index: 3, kind: output, shape index: {}]
  %s4 = sld [smem:[#allocation0]]
  $region61: #{tpu_custom_call.1} parent=0
    _
  %s6 = ssub.s32 1, %s4
  %s7 = scalar_select 0, %s6, %s4
  $region1: #{tpu_custom_call.1} parent=0
    #allocation5 [shape = 'u8[8192]{0}', space=vmem, size = 0x2000, scoped, tag = 'input window, operand 0, single buffered']
    #allocation6 [shape = 's32[2]{0}', space=sflag, size = 0x8, scoped, tag = 'scoped memory for tpu_custom_call.1']
    #allocation7 [shape = 'u8[262144]{0}', space=vmem, size = 0x40000, scoped, tag = 'input window, operand 2']
    #allocation8 [shape = 's32[2]{0}', space=sflag, size = 0x8, scoped, tag = 'scoped memory for tpu_custom_call.1']
    %8 = vsyncpa [#allocation6], 0
    %9 = vsyncpa [#allocation8], 0
    %s10 = scalar_lea.sflag [#allocation8], 1
    %11 = vsyncpa %s10, 0
    loop: start=0, step=1, limit=6
    $region2: #{tpu_custom_call.1} parent=1 // loop_pre_header
      _
    $region3: #{tpu_custom_call.1} parent=1 // loop_header
      %s13 = sphi 0, %s17
      %p14 = scmp.ge.s32.totalorder %s13, 6
      %s21 = sphi 0, %s21
      %s23 = sphi 0, %s21
      %s24 = sphi 0, %s23
      %s38 = sphi 0, %s24
      %s42 = sphi 0, %s42
      %s44 = sphi 0, %s42
      %s45 = sphi 0, %s44
      %s59 = sphi 0, %s45
      %s65 = sphi 0, %s67
      %s68 = sphi 0, %s65
      %s69 = sphi 0, %s68
      %s85 = sphi 0, %s69
      %s89 = sphi 0, %s89
      %s91 = sphi 0, %s89
      %s92 = sphi 0, %s91
      %s106 = sphi 0, %s92
    $region4: #{tpu_custom_call.1} parent=1 // loop_header_branch
      %16 = sbr.rel (%p14) target = $region8
    $region5: #{tpu_custom_call.1} parent=1 // loop_body
      %s18 = ssub.s32 %s13, 1
      %s19 = ssub.s32 %s13, 2
      %s20 = sadd.s32 %s13, 1
      %s22 = sadd.s32 %s21, 1
      %p25 = scmp.eq.s32.totalorder %s13, 3
      %p26 = scmp.ne.s32.totalorder %s21, %s23
      %p27 = scmp.eq.s32.totalorder %s13, 0
      %p28 = por %p26, %p27
      %p29 = scmp.ne.s32.totalorder %s21, %s23
      %p30 = scmp.eq.s32.totalorder %s18, 3
      %p31 = por %p29, %p30
      %p32 = scmp.ne.s32.totalorder %s23, %s24
      %p33 = scmp.eq.s32.totalorder %s18, 0
      %p34 = por %p32, %p33
      %p35 = scmp.ne.s32.totalorder %s23, %s24
      %p36 = scmp.eq.s32.totalorder %s19, 3
      %p37 = por %p35, %p36
      %p39 = scmp.ne.s32.totalorder %s24, %s38
      %p40 = scmp.eq.s32.totalorder %s19, 0
      %p41 = por %p39, %p40
      %s43 = sadd.s32 %s42, 1
      %p46 = scmp.eq.s32.totalorder %s13, 3
      %p47 = scmp.ne.s32.totalorder %s42, %s44
      %p48 = scmp.eq.s32.totalorder %s13, 0
      %p49 = por %p47, %p48
      %p50 = scmp.ne.s32.totalorder %s42, %s44
      %p51 = scmp.eq.s32.totalorder %s18, 3
      %p52 = por %p50, %p51
      %p53 = scmp.ne.s32.totalorder %s44, %s45
      %p54 = scmp.eq.s32.totalorder %s18, 0
      %p55 = por %p53, %p54
      %p56 = scmp.ne.s32.totalorder %s44, %s45
      %p57 = scmp.eq.s32.totalorder %s19, 3
      %p58 = por %p56, %p57
      %p60 = scmp.ne.s32.totalorder %s45, %s59
      %p61 = scmp.eq.s32.totalorder %s19, 0
      %p62 = por %p60, %p61
      %s63 = ssub.s32 %s13, %s20
      %p64 = scmp.eq.s32.totalorder %s63, 0
      %s66 = sadd.s32 %s65, 1
      %s67 = scalar_select %p64, %s65, %s66
      %p70 = pneg %p64
      %p71 = scmp.eq.s32.totalorder %s13, 3
      %p72 = por %p70, %p71
      %p73 = scmp.ne.s32.totalorder %s65, %s68
      %p74 = scmp.eq.s32.totalorder %s13, 0
      %p75 = por %p73, %p74
      %p76 = scmp.ne.s32.totalorder %s65, %s68
      %p77 = scmp.eq.s32.totalorder %s18, 3
      %p78 = por %p76, %p77
      %p79 = scmp.ne.s32.totalorder %s68, %s69
      %p80 = scmp.eq.s32.totalorder %s18, 0
      %p81 = por %p79, %p80
      %p82 = scmp.ne.s32.totalorder %s68, %s69
      %p83 = scmp.eq.s32.totalorder %s19, 3
      %p84 = por %p82, %p83
      %p86 = scmp.ne.s32.totalorder %s69, %s85
      %p87 = scmp.eq.s32.totalorder %s19, 0
      %p88 = por %p86, %p87
      %s90 = sadd.s32 %s89, 1
      %p93 = scmp.eq.s32.totalorder %s13, 3
      %p94 = scmp.ne.s32.totalorder %s89, %s91
      %p95 = scmp.eq.s32.totalorder %s13, 0
      %p96 = por %p94, %p95
      %p97 = scmp.ne.s32.totalorder %s89, %s91
      %p98 = scmp.eq.s32.totalorder %s18, 3
      %p99 = por %p97, %p98
      %p100 = scmp.ne.s32.totalorder %s91, %s92
      %p101 = scmp.eq.s32.totalorder %s18, 0
      %p102 = por %p100, %p101
      %p103 = scmp.ne.s32.totalorder %s91, %s92
      %p104 = scmp.eq.s32.totalorder %s19, 3
      %p105 = por %p103, %p104
      %p107 = scmp.ne.s32.totalorder %s92, %s106
      %p108 = scmp.eq.s32.totalorder %s19, 0
      %p109 = por %p107, %p108
      %p110 = scmp.le.s32.totalorder 1, %s13
      %p111 = scmp.lt.s32.totalorder %s13, 5
      %p112 = pnand %p110, %p111
      %p113 = pneg %p112
      // Predicated region
      $region9: #{tpu_custom_call.1} parent=5 // pred_check
        _
      $region10: #{tpu_custom_call.1} parent=5 // pred_check_branch
        %115 = sbr.rel (%p112) target = $region12
      $region11: #{tpu_custom_call.1} parent=5 // pred_region
        %s116 = ssub.s32 %s13, 1
        // Predicated region
        $region13: #{tpu_custom_call.1} parent=11 // pred_check
          %p117 = pneg %p34
        $region14: #{tpu_custom_call.1} parent=11 // pred_check_branch
          %119 = sbr.rel (%p117) target = $region16
        $region15: #{tpu_custom_call.1} parent=11 // pred_region
          %s121 = ssub.s32 256, 256
          %122 = vsyncadd [#allocation6], %s121
          %s124 = sshll.u32 [#allocation5], 4
          %s125 = int_to_ptr.vmem [resolvable:$true] %s124
          %127 = dma.hbm_to_vmem [thread:$0]  %s0, 256, %s125, [#allocation6]
        $region16: #{tpu_custom_call.1} parent=11 // pred_fallthru
          _
        // Predicated region
        $region17: #{tpu_custom_call.1} parent=11 // pred_check
          %p128 = pneg %p55
        $region18: #{tpu_custom_call.1} parent=11 // pred_check_branch
          %130 = sbr.rel (%p128) target = $region20
        $region19: #{tpu_custom_call.1} parent=11 // pred_region
          _
        $region20: #{tpu_custom_call.1} parent=11 // pred_fallthru
          _
      $region12: #{tpu_custom_call.1} parent=5 // pred_fallthru
        _
      %p131 = scmp.lt.s32.totalorder %s13, 4
      // Predicated region
      $region21: #{tpu_custom_call.1} parent=5 // pred_check
        %p132 = pneg %p131
      $region22: #{tpu_custom_call.1} parent=5 // pred_check_branch
        %134 = sbr.rel (%p132) target = $region24
      $region23: #{tpu_custom_call.1} parent=5 // pred_region
        // Predicated region
        $region25: #{tpu_custom_call.1} parent=23 // pred_check
          %p135 = pneg %p75
        $region26: #{tpu_custom_call.1} parent=23 // pred_check_branch
          %137 = sbr.rel (%p135) target = $region28
        $region27: #{tpu_custom_call.1} parent=23 // pred_region
          %s138 = sand.u32 %s65, 1
          %s139 = scalar_lea.sflag [#allocation8], %s138
          %s140 = sand.u32 %s65, 1
          %s141 = smul.addr %s140, 256
          %s142 = scalar_lea.vmem [#allocation7], %s141
          %s143 = smul.u32 32, %s13
          %s145 = ssub.s32 4096, 4096
          %146 = vsyncadd %s139, %s145
          %s147 = smul.addr %s143, 2
          %s148 = smul.addr %s147, 64
          %s149 = scalar_lea.hbm %s2, %s148
          %s150 = sshll.u32 %s142, 4
          %s151 = int_to_ptr.vmem [resolvable:$true] %s150
          %156 = dma.hbm_to_vmem [thread:$0]  %s149, 4096, %s151, %s139, 128, 128, 8
        $region28: #{tpu_custom_call.1} parent=23 // pred_fallthru
          _
      $region24: #{tpu_custom_call.1} parent=5 // pred_fallthru
        _
      %p157 = scmp.le.s32.totalorder 1, %s13
      %p158 = scmp.lt.s32.totalorder %s13, 5
      %p159 = pnand %p157, %p158
      %p160 = pneg %p159
      // Predicated region
      $region29: #{tpu_custom_call.1} parent=5 // pred_check
        _
      $region30: #{tpu_custom_call.1} parent=5 // pred_check_branch
        %162 = sbr.rel (%p159) target = $region32
      $region31: #{tpu_custom_call.1} parent=5 // pred_region
        %s163 = ssub.s32 %s13, 1
        // Predicated region
        $region33: #{tpu_custom_call.1} parent=31 // pred_check
          %p164 = pneg %p34
        $region34: #{tpu_custom_call.1} parent=31 // pred_check_branch
          %166 = sbr.rel (%p164) target = $region36
        $region35: #{tpu_custom_call.1} parent=31 // pred_region
          %167 = dma.done [#allocation6], 256
        $region36: #{tpu_custom_call.1} parent=31 // pred_fallthru
          _
        %s168 = sand.u32 %s68, 1
        %s169 = scalar_lea.sflag [#allocation8], %s168
        %s170 = sand.u32 %s68, 1
        %s171 = smul.addr %s170, 256
        %s172 = scalar_lea.vmem [#allocation7], %s171
        // Predicated region
        $region37: #{tpu_custom_call.1} parent=31 // pred_check
          %p173 = pneg %p81
        $region38: #{tpu_custom_call.1} parent=31 // pred_check_branch
          %175 = sbr.rel (%p173) target = $region40
        $region39: #{tpu_custom_call.1} parent=31 // pred_region
          %176 = dma.done %s169, 4096
        $region40: #{tpu_custom_call.1} parent=31 // pred_fallthru
          _
        %p177 = pneg %p34
        %p178 = pneg %p31
        %p179 = pneg %p55
        %p180 = pneg %p52
        %s181 = sand.u32 %s68, 1
        %s182 = scalar_lea.sflag [#allocation8], %s181
        %s183 = sand.u32 %s68, 1
        %s184 = smul.addr %s183, 256
        %s185 = scalar_lea.vmem [#allocation7], %s184
        %p186 = pneg %p81
        %p187 = pneg %p78
        %p188 = pneg %p102
        %p189 = pneg %p99
        %s190 = smul.u32 32, %s18
        %p191 = scmp.eq.s32.totalorder %s18, 0
        // Predicated region
        $region41: #{tpu_custom_call.1} parent=31 // pred_check
          %p192 = pneg %p191
        $region42: #{tpu_custom_call.1} parent=31 // pred_check_branch
          %194 = sbr.rel (%p192) target = $region44
        $region43: #{tpu_custom_call.1} parent=31 // pred_region
          %v195 = vld [vmem:[#allocation5] sm:$0xff]
          %v196 = vld [vmem:[#allocation5 + $0x8] sm:$0xff]
          %v197 = vmul.f32 %v195, %v195
          %v198 = vmul.f32 %v196, %v196
          %v199 = vadd.f32 %v197, %v198
          %200 = vadd.xlane.f32.xlu0 %v199
          %v201 = vpop.xlane.xlu0 %200
          %v202 = vrcp.pop 256.0
          %v203 = vmul.f32 %v201, %v202
          %v204 = vadd.f32 %v203, 1e-05
          %v205 = vrsqrt.pop %v204
          %v206 = vmul.f32 %v195, %v205
          %v207 = vmul.f32 %v196, %v205
          %v208 = vld [vmem:[%s1] sm:$0x3]
          %v210 = vlaneseq
          %v211 = vshrl.u32 %v210, 7
          %v212 = vsub.s32 0, %v211
          %v213 = vrot.slane %v208, %v212
          %v214 = vlaneseq
          %v215 = vshrl.u32 %v214, 7
          %v216 = vsub.s32 1, %v215
          %v217 = vrot.slane %v208, %v216
          %v220 = vmul.f32 %v206, %v213
          %v221 = vmul.f32 %v207, %v217
          %v222 = vpack.c.bf16 %v220, %v220
          %v223 = vpack.c.bf16 %v221, %v221
          %v226 = vunpack.c.l.b16 %v222
          %v227 = vunpack.c.l.b16 %v223
          %v228 = vpack.c.b16 %v227, %v226
          %230 = vst [vmem:[#allocation2] sm:$0xff] %v228
          %vm231 = vcmask 7168
          %232 = vst.msk [vmem:[#allocation3] sm:$0xff] %vm231, -inf
          %233 = vst.msk [vmem:[#allocation4] sm:$0xff] %vm231, 0
        $region44: #{tpu_custom_call.1} parent=31 // pred_fallthru
          _
        %v234 = vld [vmem:[#allocation2] sm:$0xff]
        %v235 = vld [vmem:[%s172] sm:$0xff]
        %v236 = vld [vmem:[%s172 + $0x8] sm:$0xff]
        %v237 = vld [vmem:[%s172 + $0x10] sm:$0xff]
        %v238 = vld [vmem:[%s172 + $0x18] sm:$0xff]
        %v239 = vld [vmem:[%s172 + $0x20] sm:$0xff]
        %v240 = vld [vmem:[%s172 + $0x28] sm:$0xff]
        %v241 = vld [vmem:[%s172 + $0x30] sm:$0xff]
        %v242 = vld [vmem:[%s172 + $0x38] sm:$0xff]
        %v243 = vld [vmem:[%s172 + $0x40] sm:$0xff]
        %v244 = vld [vmem:[%s172 + $0x48] sm:$0xff]
        %v245 = vld [vmem:[%s172 + $0x50] sm:$0xff]
        %v246 = vld [vmem:[%s172 + $0x58] sm:$0xff]
        %v247 = vld [vmem:[%s172 + $0x60] sm:$0xff]
        %v248 = vld [vmem:[%s172 + $0x68] sm:$0xff]
        %v249 = vld [vmem:[%s172 + $0x70] sm:$0xff]
        %v250 = vld [vmem:[%s172 + $0x78] sm:$0xff]
        %v251 = vld [vmem:[%s172 + $0x80] sm:$0xff]
        %v252 = vld [vmem:[%s172 + $0x88] sm:$0xff]
        %v253 = vld [vmem:[%s172 + $0x90] sm:$0xff]
        %v254 = vld [vmem:[%s172 + $0x98] sm:$0xff]
        %v255 = vld [vmem:[%s172 + $0xa0] sm:$0xff]
        %v256 = vld [vmem:[%s172 + $0xa8] sm:$0xff]
        %v257 = vld [vmem:[%s172 + $0xb0] sm:$0xff]
        %v258 = vld [vmem:[%s172 + $0xb8] sm:$0xff]
        %v259 = vld [vmem:[%s172 + $0xc0] sm:$0xff]
        %v260 = vld [vmem:[%s172 + $0xc8] sm:$0xff]
        %v261 = vld [vmem:[%s172 + $0xd0] sm:$0xff]
        %v262 = vld [vmem:[%s172 + $0xd8] sm:$0xff]
        %v263 = vld [vmem:[%s172 + $0xe0] sm:$0xff]
        %v264 = vld [vmem:[%s172 + $0xe8] sm:$0xff]
        %v265 = vld [vmem:[%s172 + $0xf0] sm:$0xff]
        %v266 = vld [vmem:[%s172 + $0xf8] sm:$0xff]
        %v268 = vunpack.c.l.b16 %v234
        %v269 = vunpack.c.h.b16 %v234
        %v270 = vpack.c.b16 %v268, %v268
        %v271 = vpack.c.b16 %v269, %v269
        %v306 = vunpack.c.l.b16 %v235
        %v307 = vunpack.c.h.b16 %v235
        %v308 = vunpack.c.l.b16 %v236
        %v309 = vunpack.c.h.b16 %v236
        %v310 = vunpack.c.l.b16 %v237
        %v311 = vunpack.c.h.b16 %v237
        %v312 = vunpack.c.l.b16 %v238
        %v313 = vunpack.c.h.b16 %v238
        %v314 = vunpack.c.l.b16 %v239
        %v315 = vunpack.c.h.b16 %v239
        %v316 = vunpack.c.l.b16 %v240
        %v317 = vunpack.c.h.b16 %v240
        %v318 = vunpack.c.l.b16 %v241
        %v319 = vunpack.c.h.b16 %v241
        %v320 = vunpack.c.l.b16 %v242
        %v321 = vunpack.c.h.b16 %v242
        %v322 = vunpack.c.l.b16 %v243
        %v323 = vunpack.c.h.b16 %v243
        %v324 = vunpack.c.l.b16 %v244
        %v325 = vunpack.c.h.b16 %v244
        %v326 = vunpack.c.l.b16 %v245
        %v327 = vunpack.c.h.b16 %v245
        %v328 = vunpack.c.l.b16 %v246
        %v329 = vunpack.c.h.b16 %v246
        %v330 = vunpack.c.l.b16 %v247
        %v331 = vunpack.c.h.b16 %v247
        %v332 = vunpack.c.l.b16 %v248
        %v333 = vunpack.c.h.b16 %v248
        %v334 = vunpack.c.l.b16 %v249
        %v335 = vunpack.c.h.b16 %v249
        %v336 = vunpack.c.l.b16 %v250
        %v337 = vunpack.c.h.b16 %v250
        %v338 = vunpack.c.l.b16 %v251
        %v339 = vunpack.c.h.b16 %v251
        %v340 = vunpack.c.l.b16 %v252
        %v341 = vunpack.c.h.b16 %v252
        %v342 = vunpack.c.l.b16 %v253
        %v343 = vunpack.c.h.b16 %v253
        %v344 = vunpack.c.l.b16 %v254
        %v345 = vunpack.c.h.b16 %v254
        %v346 = vunpack.c.l.b16 %v255
        %v347 = vunpack.c.h.b16 %v255
        %v348 = vunpack.c.l.b16 %v256
        %v349 = vunpack.c.h.b16 %v256
        %v350 = vunpack.c.l.b16 %v257
        %v351 = vunpack.c.h.b16 %v257
        %v352 = vunpack.c.l.b16 %v258
        %v353 = vunpack.c.h.b16 %v258
        %v354 = vunpack.c.l.b16 %v259
        %v355 = vunpack.c.h.b16 %v259
        %v356 = vunpack.c.l.b16 %v260
        %v357 = vunpack.c.h.b16 %v260
        %v358 = vunpack.c.l.b16 %v261
        %v359 = vunpack.c.h.b16 %v261
        %v360 = vunpack.c.l.b16 %v262
        %v361 = vunpack.c.h.b16 %v262
        %v362 = vunpack.c.l.b16 %v263
        %v363 = vunpack.c.h.b16 %v263
        %v364 = vunpack.c.l.b16 %v264
        %v365 = vunpack.c.h.b16 %v264
        %v366 = vunpack.c.l.b16 %v265
        %v367 = vunpack.c.h.b16 %v265
        %v368 = vunpack.c.l.b16 %v266
        %v369 = vunpack.c.h.b16 %v266
        %v370 = vpack.c.b16 %v308, %v306
        %v371 = vpack.c.b16 %v309, %v307
        %v372 = vpack.c.b16 %v312, %v310
        %v373 = vpack.c.b16 %v313, %v311
        %v374 = vpack.c.b16 %v316, %v314
        %v375 = vpack.c.b16 %v317, %v315
        %v376 = vpack.c.b16 %v320, %v318
        %v377 = vpack.c.b16 %v321, %v319
        %v378 = vpack.c.b16 %v324, %v322
        %v379 = vpack.c.b16 %v325, %v323
        %v380 = vpack.c.b16 %v328, %v326
        %v381 = vpack.c.b16 %v329, %v327
        %v382 = vpack.c.b16 %v332, %v330
        %v383 = vpack.c.b16 %v333, %v331
        %v384 = vpack.c.b16 %v336, %v334
        %v385 = vpack.c.b16 %v337, %v335
        %v386 = vpack.c.b16 %v340, %v338
        %v387 = vpack.c.b16 %v341, %v339
        %v388 = vpack.c.b16 %v344, %v342
        %v389 = vpack.c.b16 %v345, %v343
        %v390 = vpack.c.b16 %v348, %v346
        %v391 = vpack.c.b16 %v349, %v347
        %v392 = vpack.c.b16 %v352, %v350
        %v393 = vpack.c.b16 %v353, %v351
        %v394 = vpack.c.b16 %v356, %v354
        %v395 = vpack.c.b16 %v357, %v355
        %v396 = vpack.c.b16 %v360, %v358
        %v397 = vpack.c.b16 %v361, %v359
        %v398 = vpack.c.b16 %v364, %v362
        %v399 = vpack.c.b16 %v365, %v363
        %v400 = vpack.c.b16 %v368, %v366
        %v401 = vpack.c.b16 %v369, %v367
        %434 = vmatprep.subr.bf16.mxu0 %v371
        %435 = vmatpush1.bf16.xpose.msra.mxu0 %v370
        %436 = vmatprep.subr.bf16.mxu0 %v373
        %437 = vmatpush1.bf16.xpose.msra.mxu0 %v372
        %438 = vmatprep.subr.bf16.mxu0 %v375
        %439 = vmatpush1.bf16.xpose.msra.mxu0 %v374
        %440 = vmatprep.subr.bf16.mxu0 %v377
        %441 = vmatpush1.bf16.xpose.msra.mxu0 %v376
        %442 = vmatprep.subr.bf16.mxu0 %v379
        %443 = vmatpush1.bf16.xpose.msra.mxu0 %v378
        %444 = vmatprep.subr.bf16.mxu0 %v381
        %445 = vmatpush1.bf16.xpose.msra.mxu0 %v380
        %446 = vmatprep.subr.bf16.mxu0 %v383
        %447 = vmatpush1.bf16.xpose.msra.mxu0 %v382
        %448 = vmatprep.subr.bf16.mxu0 %v385
        %449 = vmatpush1.bf16.xpose.msra.mxu0 %v384
        %450 = vmatprep.subr.bf16.mxu0 %v387
        %451 = vmatpush1.bf16.xpose.msra.mxu0 %v386
        %452 = vmatprep.subr.bf16.mxu0 %v389
        %453 = vmatpush1.bf16.xpose.msra.mxu0 %v388
        %454 = vmatprep.subr.bf16.mxu0 %v391
        %455 = vmatpush1.bf16.xpose.msra.mxu0 %v390
        %456 = vmatprep.subr.bf16.mxu0 %v393
        %457 = vmatpush1.bf16.xpose.msra.mxu0 %v392
        %458 = vmatprep.subr.bf16.mxu0 %v395
        %459 = vmatpush1.bf16.xpose.msra.mxu0 %v394
        %460 = vmatprep.subr.bf16.mxu0 %v397
        %461 = vmatpush1.bf16.xpose.msra.mxu0 %v396
        %462 = vmatprep.subr.bf16.mxu0 %v399
        %463 = vmatpush1.bf16.xpose.msra.mxu0 %v398
        %464 = vmatprep.subr.bf16.mxu0 %v401
        %465 = vmatpush1.bf16.xpose.msra.mxu0 %v400
        %466 = vmatprep.mubr.bf16.mxu0 %v271
        %467 = vmatmul.mubr.bf16.gmra.mrb[0].mxu0 %v270
        %v468 = vpop.f32.mrb[0].mxu0
        %v469 = vadd.f32 0.0, %v468
        %v470 = vpop.f32.mrb[0].mxu0
        %v471 = vadd.f32 0.0, %v470
        %v472 = vpop.f32.mrb[0].mxu0
        %v473 = vpop.f32.mrb[0].mxu0
        %474 = vdwg.mxu0
        %v475 = vlaneseq
        %v476 = vand.u32 %v475, 127
        %v477 = vadd.s32 %v476, 128
        %s478 = smul.u32 %s18, 256
        %v479 = vstv %s478
        %v480 = vadd.s32 %v476, %v479
        %v481 = vadd.s32 %v477, %v479
        %vm482 = vcmp.lt.s32.totalorder %v480, 1000
        %vm483 = vcmp.lt.s32.totalorder %v481, 1000
        %v484 = vsel %vm482, %v469, -inf
        %v485 = vsel %vm483, %v471, -inf
        %v486 = vmax.f32 %v484, %v485
        %487 = vmax.xlane.f32.xlu0 %v486
        %v488 = vpop.xlane.xlu0 %487
        %vm489 = vcmp.eq.f32.partialorder %v484, %v488
        %vm490 = vcmp.eq.f32.partialorder %v485, %v488
        %v491 = vsel %vm489, %v480, 2147483647
        %v492 = vsel %vm490, %v481, 2147483647
        %vm493 = vcmp.lt.s32.totalorder %v491, %v492
        %v494 = vsel %vm493, %v491, %v492
        %v495 = vand.u32 %v494, 65535
        %v496 = vshra.s32 %v494, 16
        %v497 = vcvt.s32.f32 %v495
        %v498 = vcvt.s32.f32 %v496
        %499 = vmin.xlane.f32.xlu0 %v498
        %v500 = vpop.xlane.xlu0 %499
        %vm501 = vcmp.eq.f32.partialorder %v498, %v500
        %v502 = vsel %vm501, %v497, inf
        %503 = vmin.xlane.f32.xlu0 %v502
        %v504 = vpop.xlane.xlu0 %503
        %v505 = vcvt.f32.s32 %v504
        %v506 = vcvt.f32.s32 %v500
        %v507 = vshll.u32 %v506, 16
        %v508 = vadd.s32 %v507, %v505
        %v509 = vld [vmem:[#allocation3] sm:$0xff]
        %vm510 = vcmp.gt.f32.partialorder %v488, %v509
        %v511 = vld [vmem:[#allocation4] sm:$0xff]
        %v512 = vsel %vm510, %v508, %v511
        %vm513 = vcmask 7168
        %514 = vst.msk [vmem:[#allocation4] sm:$0xff] %vm513, %v512
        %v515 = vld [vmem:[#allocation3] sm:$0xff]
        %v516 = vsel %vm510, %v488, %v515
        %517 = vst.msk [vmem:[#allocation3] sm:$0xff] %vm513, %v516
        %p518 = scmp.eq.s32.totalorder %s18, 3
        // Predicated region
        $region45: #{tpu_custom_call.1} parent=31 // pred_check
          %p519 = pneg %p518
        $region46: #{tpu_custom_call.1} parent=31 // pred_check_branch
          %521 = sbr.rel (%p519) target = $region48
        $region47: #{tpu_custom_call.1} parent=31 // pred_region
          %v522 = vld [vmem:[#allocation4] sm:$0xff]
          %523 = vst.msk [vmem:[%s3] sm:$0xff] %vm513, %v522
        $region48: #{tpu_custom_call.1} parent=31 // pred_fallthru
          _
        // Predicated region
        $region49: #{tpu_custom_call.1} parent=31 // pred_check
          %p524 = pneg %p99
        $region50: #{tpu_custom_call.1} parent=31 // pred_check_branch
          %526 = sbr.rel (%p524) target = $region52
        $region51: #{tpu_custom_call.1} parent=31 // pred_region
          _
        $region52: #{tpu_custom_call.1} parent=31 // pred_fallthru
          _
        // Predicated region
        $region53: #{tpu_custom_call.1} parent=31 // pred_check
          %p527 = pneg %p99
        $region54: #{tpu_custom_call.1} parent=31 // pred_check_branch
          %529 = sbr.rel (%p527) target = $region56
        $region55: #{tpu_custom_call.1} parent=31 // pred_region
          _
        $region56: #{tpu_custom_call.1} parent=31 // pred_fallthru
          _
      $region32: #{tpu_custom_call.1} parent=5 // pred_fallthru
        _
      %p530 = scmp.le.s32.totalorder 2, %s13
      // Predicated region
      $region57: #{tpu_custom_call.1} parent=5 // pred_check
        %p531 = pneg %p530
      $region58: #{tpu_custom_call.1} parent=5 // pred_check_branch
        %533 = sbr.rel (%p531) target = $region60
      $region59: #{tpu_custom_call.1} parent=5 // pred_region
        %s534 = ssub.s32 %s13, 2
      $region60: #{tpu_custom_call.1} parent=5 // pred_fallthru
        _
    $region6: #{tpu_custom_call.1} parent=1 // loop_footer
      %s17 = sadd.s32 1, %s13
    $region7: #{tpu_custom_call.1} parent=1 // loop_footer_branch
      %12 = sbr.rel target = $region3
    $region8: #{tpu_custom_call.1} parent=1 // loop_exit
      _
    %535 = vsyncpa [#allocation6], 1
    %s536 = scalar_lea.sflag [#allocation6], 1
    %537 = vsyncpa %s536, 1
    %538 = vsyncpa [#allocation8], 1
    %s539 = scalar_lea.sflag [#allocation8], 1
    %540 = vsyncpa %s539, 1

</llo_original>
